<compile_context>
chip_gen: v7x
topology: tpu7x:2x2x1
jax: 0.10.0
libtpu: 0.0.40
codegen_flags: <defaults>
</compile_context>

<pallas_src>
import jax
import jax.numpy as jnp
from jax.experimental import pallas as pl
from jax.experimental.pallas import tpu as pltpu


def _spectral_mul_kernel(x_ref, w_ref, o_ref):
    # x_ref: (TM, 2*B, C_in)     sublanes 0..B-1 = Re(x_ft), B..2B-1 = Im(x_ft)
    # w_ref: (TM, C_in, 2*C_out) lanes [Wr | Wi]   (dedup'd: Wr/Wi stored once)
    # o_ref: (TM, B, 2*C_out)    lanes [Re(out) | Im(out)]
    dn = (((2,), (1,)), ((0,), (0,)))  # contract C_in; batch the mode axis
    res = jax.lax.dot_general(x_ref[...], w_ref[...], dn,
                              preferred_element_type=jnp.float32)
    # res: (TM, 2B, 2*C_out) = [[xr*Wr | xr*Wi], [xi*Wr | xi*Wi]]
    b = o_ref.shape[1]
    c_out = o_ref.shape[2] // 2
    out_re = res[:, :b, :c_out] - res[:, b:, c_out:]   # xr*Wr - xi*Wi
    out_im = res[:, :b, c_out:] + res[:, b:, :c_out]   # xr*Wi + xi*Wr
    o_ref[...] = jnp.concatenate([out_re, out_im], axis=-1).astype(o_ref.dtype)


def _vmem_capacity_bytes():
    """Per-TensorCore VMEM capacity; conservative fallback if the query fails."""
    try:
        cap = int(getattr(pltpu.get_tpu_info(), "vmem_capacity_bytes", 0))
        if cap > 0:
            return cap
    except Exception:
        pass
    return 64 * 1024 * 1024  # v7x per-TC VMEM (smallest of v5e/v6e/v7x)


def _choose_mode_block(n_modes, bytes_per_mode, vmem_budget_bytes):
    """Pick TM (modes per grid step).

    TM is a divisor of n_modes (no padding -> no garbage weight modes streamed),
    sized so 2x (double-buffered) blocks fit the per-TC VMEM budget, preferring
    an even step count >= 4 so v7x's two TensorCores each run >= 2 balanced
    steps of the parallel mode grid (odd/1-step grids idle or imbalance a TC).
    """
    tm_cap = max(1, vmem_budget_bytes // (2 * bytes_per_mode))
    divisors = [d for d in range(1, n_modes + 1)
                if n_modes % d == 0 and d <= tm_cap]
    if not divisors:
        divisors = [1]

    def steps(d):
        return n_modes // d

    for ok in (lambda d: steps(d) % 2 == 0 and steps(d) >= 4,  # balanced + pipelined
               lambda d: steps(d) == 2,                        # balanced (1 step / TC)
               lambda d: True):                                # e.g. prime n_modes
        cands = [d for d in divisors if ok(d)]
        if cands:
            return max(cands)
    return 1  # unreachable


def pack_spectral_weights(w_complex):
    """Pack (C_in, C_out, M) complex64 weights ONCE per layer into the
    mode-major, de-duplicated real layout (M, C_in, 2*C_out) = [Wr | Wi]."""
    wm = jnp.transpose(w_complex, (2, 0, 1))                    # (M, C_in, C_out)
    return jnp.concatenate(
        [jnp.real(wm), jnp.imag(wm)], axis=-1).astype(jnp.float32)


def spectral_complex_mul(x_ft_modes, w_packed):
    """x_ft_modes: complex64 (B, C_in, M); w_packed: f32 (M, C_in, 2*C_out).
    Returns complex64 (B, C_out, M), i.e. einsum('bix,iox->box') with the
    complex weights that produced w_packed."""
    B, C_in, M = x_ft_modes.shape
    assert w_packed.shape[0] == M and w_packed.shape[1] == C_in
    C_out = w_packed.shape[2] // 2
    Nv = 2 * C_out

    # Pack activations: mode-major, Re rows stacked over Im rows (sublane axis).
    xm = jnp.transpose(x_ft_modes, (2, 0, 1))                   # (M, B, C_in) complex
    x_packed = jnp.concatenate(
        [jnp.real(xm), jnp.imag(xm)], axis=1).astype(jnp.float32)  # (M, 2B, C_in)

    bytes_per_mode = 4 * (2 * B * C_in + C_in * Nv + B * Nv)
    vmem_capacity = _vmem_capacity_bytes()
    vmem_budget = int(vmem_capacity * 0.60)       # for double-buffered blocks
    vmem_limit = int(vmem_capacity * 0.75)        # explicit scoped-VMEM limit
    TM = _choose_mode_block(M, bytes_per_mode, vmem_budget)

    flops = 8 * M * B * C_in * C_out              # 2 * M * (2B) * C_in * (2*C_out)
    bytes_accessed = M * bytes_per_mode

    out_packed = pl.pallas_call(
        _spectral_mul_kernel,
        out_shape=jax.ShapeDtypeStruct((M, B, Nv), jnp.float32),
        grid_spec=pltpu.PrefetchScalarGridSpec(
            num_scalar_prefetch=0,
            grid=(M // TM,),
            in_specs=[
                pl.BlockSpec((TM, 2 * B, C_in), lambda m: (m, 0, 0)),
                pl.BlockSpec((TM, C_in, Nv), lambda m: (m, 0, 0)),
            ],
            out_specs=pl.BlockSpec((TM, B, Nv), lambda m: (m, 0, 0)),
        ),
        compiler_params=pltpu.CompilerParams(
            dimension_semantics=("parallel",),    # independent mode blocks
            vmem_limit_bytes=vmem_limit),
        cost_estimate=pl.CostEstimate(
            flops=flops, transcendentals=0, bytes_accessed=bytes_accessed),
    )(x_packed, w_packed)

    out_c = (out_packed[:, :, :C_out]
             + 1j * out_packed[:, :, C_out:]).astype(jnp.complex64)  # (M, B, C_out)
    return jnp.transpose(out_c, (1, 2, 0))                           # (B, C_out, M)


def spectral_conv1d(x, w_packed, modes1):
    """Forward pass of SpectralConv1d.  x: (B, C_in, N) float32.
    w_packed: pre-packed weights from pack_spectral_weights (once per layer)."""
    B, _, N = x.shape
    C_out = w_packed.shape[2] // 2
    n_freq = N // 2 + 1
    assert w_packed.shape[0] == modes1

    # TODO(synk): rfft/irfft have no Pallas primitive; done in plain JAX glue.
    x_ft = jnp.fft.rfft(x, axis=-1)                                  # (B, C_in, n_freq)
    out_modes = spectral_complex_mul(x_ft[:, :, :modes1], w_packed)  # (B, C_out, modes1)

    out_ft = jnp.zeros((B, C_out, n_freq), dtype=jnp.complex64)
    out_ft = out_ft.at[:, :, :modes1].set(out_modes)
    return jnp.fft.irfft(out_ft, n=N, axis=-1)                       # (B, C_out, N) f32


if __name__ == "__main__":
    B, C_in, C_out, N, modes1 = 2, 4, 4, 16, 4

    key = jax.random.PRNGKey(0)
    kx, kwr, kwi = jax.random.split(key, 3)

    x = jax.random.normal(kx, (B, C_in, N), dtype=jnp.float32)

    # Deterministic init matching: scale * torch.rand(in, out, modes, dtype=cfloat)
    scale = 1.0 / (C_in * C_out)
    w_real = scale * jax.random.uniform(kwr, (C_in, C_out, modes1), dtype=jnp.float32)
    w_imag = scale * jax.random.uniform(kwi, (C_in, C_out, modes1), dtype=jnp.float32)
    w_complex = (w_real + 1j * w_imag).astype(jnp.complex64)

    # Weight packing is hoisted out of the forward path (done once per layer).
    w_packed = jax.block_until_ready(pack_spectral_weights(w_complex))

    out = spectral_conv1d(x, w_packed, modes1)
    out = jax.block_until_ready(out)

    # Pure-JAX reference of the same forward pass.
    x_ft = jnp.fft.rfft(x, axis=-1)
    ref_modes = jnp.einsum('bix,iox->box', x_ft[:, :, :modes1], w_complex)
    ref_ft = jnp.zeros((B, C_out, N // 2 + 1), dtype=jnp.complex64)
    ref_ft = ref_ft.at[:, :, :modes1].set(ref_modes)
    ref = jnp.fft.irfft(ref_ft, n=N, axis=-1)

    assert out.shape == (B, C_out, N)
    assert jnp.allclose(out, ref, atol=1e-4, rtol=1e-4)
    print("KERNEL_OK")
</pallas_src>

<mosaic_0001>
module attributes {stable_mosaic.version = 11 : i64} {
  func.func @_spectral_mul_kernel(%arg0: i32, %arg1: memref<1x4x4xf32, #tpu.memory_space<vmem>>, %arg2: memref<1x4x8xf32, #tpu.memory_space<vmem>>, %arg3: memref<1x2x8xf32, #tpu.memory_space<vmem>>) attributes {dimension_semantics = [#tpu.dimension_semantics<parallel>], iteration_bounds = array<i64: 4>, scalar_prefetch = 0 : i64, scratch_operands = 0 : i64, tpu.core_type = #tpu.core_type<tc>, window_params = [{transform_indices = @transform_0, window_bounds = array<i64: 1, 4, 4>}, {transform_indices = @transform_1, window_bounds = array<i64: 1, 4, 8>}, {transform_indices = @transform_2, window_bounds = array<i64: 1, 2, 8>}]} {
    %c0 = arith.constant 0 : index
    %c0_0 = arith.constant 0 : index
    %c0_1 = arith.constant 0 : index
    %0 = vector.load %arg1[%c0, %c0_0, %c0_1] : memref<1x4x4xf32, #tpu.memory_space<vmem>>, vector<1x4x4xf32>
    %c0_2 = arith.constant 0 : index
    %c0_3 = arith.constant 0 : index
    %c0_4 = arith.constant 0 : index
    %1 = vector.load %arg2[%c0_2, %c0_3, %c0_4] : memref<1x4x8xf32, #tpu.memory_space<vmem>>, vector<1x4x8xf32>
    %cst = arith.constant dense<0.000000e+00> : vector<1x4x8xf32>
    %2 = tpu.matmul %0, %1, %cst {dimension_numbers = #tpu.dot_dimension_numbers<[2], [1], [1], [2], [0, 0, 0, 1, 1, 2], [0], [0]>} : vector<1x4x4xf32>, vector<1x4x8xf32>, vector<1x4x8xf32> -> vector<1x4x8xf32>
    %3 = vector.extract_strided_slice %2 {offsets = [0, 0, 0], sizes = [1, 2, 4], strides = [1, 1, 1]} : vector<1x4x8xf32> to vector<1x2x4xf32>
    %4 = vector.extract_strided_slice %2 {offsets = [0, 2, 4], sizes = [1, 2, 4], strides = [1, 1, 1]} : vector<1x4x8xf32> to vector<1x2x4xf32>
    %5 = arith.subf %3, %4 : vector<1x2x4xf32>
    %6 = vector.extract_strided_slice %2 {offsets = [0, 0, 4], sizes = [1, 2, 4], strides = [1, 1, 1]} : vector<1x4x8xf32> to vector<1x2x4xf32>
    %7 = vector.extract_strided_slice %2 {offsets = [0, 2, 0], sizes = [1, 2, 4], strides = [1, 1, 1]} : vector<1x4x8xf32> to vector<1x2x4xf32>
    %8 = arith.addf %6, %7 : vector<1x2x4xf32>
    %9 = tpu.concatenate %5, %8 in 2 : vector<1x2x4xf32>, vector<1x2x4xf32> -> vector<1x2x8xf32>
    %c0_5 = arith.constant 0 : index
    %c0_6 = arith.constant 0 : index
    %c0_7 = arith.constant 0 : index
    %10 = vector.load %arg3[%c0_5, %c0_6, %c0_7] : memref<1x2x8xf32, #tpu.memory_space<vmem>>, vector<1x2x8xf32>
    tpu.vector_store %arg3[%c0_5, %c0_6, %c0_7], %9 {strides = array<i32>} : memref<1x2x8xf32, #tpu.memory_space<vmem>>, vector<1x2x8xf32>,
    return
  }
  func.func @transform_0(%arg0: i32) -> (i32, i32, i32) {
    %c0_i32 = arith.constant 0 : i32
    %c0_i32_0 = arith.constant 0 : i32
    %c0_i32_1 = arith.constant 0 : i32
    return %arg0, %c0_i32, %c0_i32_0 : i32, i32, i32
  }
  func.func @transform_1(%arg0: i32) -> (i32, i32, i32) {
    %c0_i32 = arith.constant 0 : i32
    %c0_i32_0 = arith.constant 0 : i32
    %c0_i32_1 = arith.constant 0 : i32
    return %arg0, %c0_i32, %c0_i32_0 : i32, i32, i32
  }
  func.func @transform_2(%arg0: i32) -> (i32, i32, i32) {
    %c0_i32 = arith.constant 0 : i32
    %c0_i32_0 = arith.constant 0 : i32
    %c0_i32_1 = arith.constant 0 : i32
    return %arg0, %c0_i32, %c0_i32_0 : i32, i32, i32
  }
}

</mosaic_0001>

<llo_original>
// kernel: tpu_custom_call.1
$region0: #{tpu_custom_call.1}
  #allocation0 [shape = 'u32[]', space=smem, size = 0x4, offset = 0x4, fixed_abs, tag = 'smem constant byte address 0x4 - core index']
  #allocation1 [shape = 'u32[144,128]{1,0:T(1,128)}', space=vmem, size = 0x12000, scoped, tag = 'internal scratch']
  %s0 = inlined_call_operand.hbm [shape: f32[4,4,4], index: 0, kind: input, shape index: {}]
  %s1 = inlined_call_operand.hbm [shape: f32[4,4,8], index: 1, kind: input, shape index: {}]
  %s2 = inlined_call_operand.hbm [shape: f32[4,2,8], index: 2, kind: output, shape index: {}]
  %s3 = sld [smem:[#allocation0]]
  $region49: #{tpu_custom_call.1} parent=0
    _
  %s5 = ssub.s32 1, %s3
  %s6 = scalar_select 0, %s5, %s3
  $region1: #{tpu_custom_call.1} parent=0
    #allocation2 [shape = 'u8[4096]{0}', space=vmem, size = 0x1000, scoped, tag = 'input window, operand 0']
    #allocation3 [shape = 's32[2]{0}', space=sflag, size = 0x8, scoped, tag = 'scoped memory for tpu_custom_call.1']
    #allocation4 [shape = 's32[2]{0}', space=sflag, size = 0x8, scoped, tag = 'scoped memory for tpu_custom_call.1']
    #allocation5 [shape = 'u8[4096]{0}', space=vmem, size = 0x1000, scoped, tag = 'input window, operand 1']
    #allocation6 [shape = 's32[2]{0}', space=sflag, size = 0x8, scoped, tag = 'scoped memory for tpu_custom_call.1']
    #allocation7 [shape = 'u8[2048]{0}', space=vmem, size = 0x800, scoped, tag = 'output window, operand 0']
    %7 = vsyncpa [#allocation3], 0
    %s8 = scalar_lea.sflag [#allocation3], 1
    %9 = vsyncpa %s8, 0
    %10 = vsyncpa [#allocation6], 0
    %s11 = scalar_lea.sflag [#allocation6], 1
    %12 = vsyncpa %s11, 0
    %13 = vsyncpa [#allocation4], 0
    %s14 = scalar_lea.sflag [#allocation4], 1
    %15 = vsyncpa %s14, 0
    loop: start=0, step=1, limit=6
    $region2: #{tpu_custom_call.1} parent=1 // loop_pre_header
      _
    $region3: #{tpu_custom_call.1} parent=1 // loop_header
      %s17 = sphi 0, %s21
      %p18 = scmp.ge.s32.totalorder %s17, 6
      %s27 = sphi 0, %s29
      %s30 = sphi 0, %s27
      %s31 = sphi 0, %s30
      %s47 = sphi 0, %s31
      %s53 = sphi 0, %s55
      %s56 = sphi 0, %s53
      %s57 = sphi 0, %s56
      %s73 = sphi 0, %s57
      %s79 = sphi 0, %s81
      %s82 = sphi 0, %s79
      %s83 = sphi 0, %s82
      %s99 = sphi 0, %s83
    $region4: #{tpu_custom_call.1} parent=1 // loop_header_branch
      %20 = sbr.rel (%p18) target = $region8
    $region5: #{tpu_custom_call.1} parent=1 // loop_body
      %s22 = ssub.s32 %s17, 1
      %s23 = ssub.s32 %s17, 2
      %s24 = sadd.s32 %s17, 1
      %s25 = ssub.s32 %s17, %s24
      %p26 = scmp.eq.s32.totalorder %s25, 0
      %s28 = sadd.s32 %s27, 1
      %s29 = scalar_select %p26, %s27, %s28
      %p32 = pneg %p26
      %p33 = scmp.eq.s32.totalorder %s17, 3
      %p34 = por %p32, %p33
      %p35 = scmp.ne.s32.totalorder %s27, %s30
      %p36 = scmp.eq.s32.totalorder %s17, 0
      %p37 = por %p35, %p36
      %p38 = scmp.ne.s32.totalorder %s27, %s30
      %p39 = scmp.eq.s32.totalorder %s22, 3
      %p40 = por %p38, %p39
      %p41 = scmp.ne.s32.totalorder %s30, %s31
      %p42 = scmp.eq.s32.totalorder %s22, 0
      %p43 = por %p41, %p42
      %p44 = scmp.ne.s32.totalorder %s30, %s31
      %p45 = scmp.eq.s32.totalorder %s23, 3
      %p46 = por %p44, %p45
      %p48 = scmp.ne.s32.totalorder %s31, %s47
      %p49 = scmp.eq.s32.totalorder %s23, 0
      %p50 = por %p48, %p49
      %s51 = ssub.s32 %s17, %s24
      %p52 = scmp.eq.s32.totalorder %s51, 0
      %s54 = sadd.s32 %s53, 1
      %s55 = scalar_select %p52, %s53, %s54
      %p58 = pneg %p52
      %p59 = scmp.eq.s32.totalorder %s17, 3
      %p60 = por %p58, %p59
      %p61 = scmp.ne.s32.totalorder %s53, %s56
      %p62 = scmp.eq.s32.totalorder %s17, 0
      %p63 = por %p61, %p62
      %p64 = scmp.ne.s32.totalorder %s53, %s56
      %p65 = scmp.eq.s32.totalorder %s22, 3
      %p66 = por %p64, %p65
      %p67 = scmp.ne.s32.totalorder %s56, %s57
      %p68 = scmp.eq.s32.totalorder %s22, 0
      %p69 = por %p67, %p68
      %p70 = scmp.ne.s32.totalorder %s56, %s57
      %p71 = scmp.eq.s32.totalorder %s23, 3
      %p72 = por %p70, %p71
      %p74 = scmp.ne.s32.totalorder %s57, %s73
      %p75 = scmp.eq.s32.totalorder %s23, 0
      %p76 = por %p74, %p75
      %s77 = ssub.s32 %s17, %s24
      %p78 = scmp.eq.s32.totalorder %s77, 0
      %s80 = sadd.s32 %s79, 1
      %s81 = scalar_select %p78, %s79, %s80
      %p84 = pneg %p78
      %p85 = scmp.eq.s32.totalorder %s17, 3
      %p86 = por %p84, %p85
      %p87 = scmp.ne.s32.totalorder %s79, %s82
      %p88 = scmp.eq.s32.totalorder %s17, 0
      %p89 = por %p87, %p88
      %p90 = scmp.ne.s32.totalorder %s79, %s82
      %p91 = scmp.eq.s32.totalorder %s22, 3
      %p92 = por %p90, %p91
      %p93 = scmp.ne.s32.totalorder %s82, %s83
      %p94 = scmp.eq.s32.totalorder %s22, 0
      %p95 = por %p93, %p94
      %p96 = scmp.ne.s32.totalorder %s82, %s83
      %p97 = scmp.eq.s32.totalorder %s23, 3
      %p98 = por %p96, %p97
      %p100 = scmp.ne.s32.totalorder %s83, %s99
      %p101 = scmp.eq.s32.totalorder %s23, 0
      %p102 = por %p100, %p101
      %p103 = scmp.le.s32.totalorder 1, %s17
      %p104 = scmp.lt.s32.totalorder %s17, 5
      %p105 = pnand %p103, %p104
      %p106 = pneg %p105
      // Predicated region
      $region9: #{tpu_custom_call.1} parent=5 // pred_check
        _
      $region10: #{tpu_custom_call.1} parent=5 // pred_check_branch
        %108 = sbr.rel (%p105) target = $region12
      $region11: #{tpu_custom_call.1} parent=5 // pred_region
        %s109 = ssub.s32 %s17, 1
      $region12: #{tpu_custom_call.1} parent=5 // pred_fallthru
        _
      %p110 = scmp.lt.s32.totalorder %s17, 4
      // Predicated region
      $region13: #{tpu_custom_call.1} parent=5 // pred_check
        %p111 = pneg %p110
      $region14: #{tpu_custom_call.1} parent=5 // pred_check_branch
        %113 = sbr.rel (%p111) target = $region16
      $region15: #{tpu_custom_call.1} parent=5 // pred_region
        // Predicated region
        $region17: #{tpu_custom_call.1} parent=15 // pred_check
          %p114 = pneg %p37
        $region18: #{tpu_custom_call.1} parent=15 // pred_check_branch
          %116 = sbr.rel (%p114) target = $region20
        $region19: #{tpu_custom_call.1} parent=15 // pred_region
          %s117 = sand.u32 %s27, 1
          %s118 = scalar_lea.sflag [#allocation3], %s117
          %s119 = sand.u32 %s27, 1
          %s120 = smul.addr %s119, 4
          %s121 = scalar_lea.vmem [#allocation2], %s120
          %s123 = ssub.s32 64, 64
          %124 = vsyncadd %s118, %s123
          %s125 = smul.addr %s17, 64
          %s126 = scalar_lea.hbm %s0, %s125
          %s128 = sshll.u32 %s121, 4
          %s129 = int_to_ptr.vmem [resolvable:$true] %s128
          %131 = dma.hbm_to_vmem [thread:$0]  %s126, 64, %s129, %s118
        $region20: #{tpu_custom_call.1} parent=15 // pred_fallthru
          _
        // Predicated region
        $region21: #{tpu_custom_call.1} parent=15 // pred_check
          %p132 = pneg %p63
        $region22: #{tpu_custom_call.1} parent=15 // pred_check_branch
          %134 = sbr.rel (%p132) target = $region24
        $region23: #{tpu_custom_call.1} parent=15 // pred_region
          %s135 = sand.u32 %s53, 1
          %s136 = scalar_lea.sflag [#allocation6], %s135
          %s137 = sand.u32 %s53, 1
          %s138 = smul.addr %s137, 4
          %s139 = scalar_lea.vmem [#allocation5], %s138
          %s141 = ssub.s32 64, 64
          %142 = vsyncadd %s136, %s141
          %s143 = smul.addr %s17, 64
          %s144 = scalar_lea.hbm %s1, %s143
          %s146 = sshll.u32 %s139, 4
          %s147 = int_to_ptr.vmem [resolvable:$true] %s146
          %149 = dma.hbm_to_vmem [thread:$0]  %s144, 64, %s147, %s136
        $region24: #{tpu_custom_call.1} parent=15 // pred_fallthru
          _
      $region16: #{tpu_custom_call.1} parent=5 // pred_fallthru
        _
      %p150 = scmp.le.s32.totalorder 1, %s17
      %p151 = scmp.lt.s32.totalorder %s17, 5
      %p152 = pnand %p150, %p151
      %p153 = pneg %p152
      // Predicated region
      $region25: #{tpu_custom_call.1} parent=5 // pred_check
        _
      $region26: #{tpu_custom_call.1} parent=5 // pred_check_branch
        %155 = sbr.rel (%p152) target = $region28
      $region27: #{tpu_custom_call.1} parent=5 // pred_region
        %s156 = ssub.s32 %s17, 1
        %s157 = sand.u32 %s30, 1
        %s158 = scalar_lea.sflag [#allocation3], %s157
        %s159 = sand.u32 %s30, 1
        %s160 = smul.addr %s159, 4
        %s161 = scalar_lea.vmem [#allocation2], %s160
        // Predicated region
        $region29: #{tpu_custom_call.1} parent=27 // pred_check
          %p162 = pneg %p43
        $region30: #{tpu_custom_call.1} parent=27 // pred_check_branch
          %164 = sbr.rel (%p162) target = $region32
        $region31: #{tpu_custom_call.1} parent=27 // pred_region
          %165 = dma.done %s158, 64
        $region32: #{tpu_custom_call.1} parent=27 // pred_fallthru
          _
        %s166 = sand.u32 %s56, 1
        %s167 = scalar_lea.sflag [#allocation6], %s166
        %s168 = sand.u32 %s56, 1
        %s169 = smul.addr %s168, 4
        %s170 = scalar_lea.vmem [#allocation5], %s169
        // Predicated region
        $region33: #{tpu_custom_call.1} parent=27 // pred_check
          %p171 = pneg %p69
        $region34: #{tpu_custom_call.1} parent=27 // pred_check_branch
          %173 = sbr.rel (%p171) target = $region36
        $region35: #{tpu_custom_call.1} parent=27 // pred_region
          %174 = dma.done %s167, 64
        $region36: #{tpu_custom_call.1} parent=27 // pred_fallthru
          _
        %s175 = sand.u32 %s30, 1
        %s176 = scalar_lea.sflag [#allocation3], %s175
        %s177 = sand.u32 %s30, 1
        %s178 = smul.addr %s177, 4
        %s179 = scalar_lea.vmem [#allocation2], %s178
        %p180 = pneg %p43
        %p181 = pneg %p40
        %s182 = sand.u32 %s56, 1
        %s183 = scalar_lea.sflag [#allocation6], %s182
        %s184 = sand.u32 %s56, 1
        %s185 = smul.addr %s184, 4
        %s186 = scalar_lea.vmem [#allocation5], %s185
        %p187 = pneg %p69
        %p188 = pneg %p66
        %p189 = pneg %p95
        %p190 = pneg %p92
        %s191 = sand.u32 %s82, 1
        %s192 = scalar_lea.sflag [#allocation4], %s191
        %s193 = sand.u32 %s82, 1
        %s194 = smul.addr %s193, 2
        %s195 = scalar_lea.vmem [#allocation7], %s194
        %v196 = vld [vmem:[%s161] sm:$0xf]
        %v197 = vld [vmem:[%s170] sm:$0xf]
        %vm198 = vcmask 31744
        %v200 = vsel %vm198, %v196, 0
        %vm202 = vcmask 1043456
        %v204 = vsel %vm202, %v197, 0
        %206 = vmatprep.subr.mxu0 0.0
        %207 = vmatpush1.msra.mxu0 %v204
        %208 = vmatprep.subr.mxu0 0.0
        %209 = vmatpush1.msra.mxu0 0.0
        %210 = vmatprep.subr.mxu0 0.0
        %211 = vmatpush1.msra.mxu0 0.0
        %212 = vmatprep.subr.mxu0 0.0
        %213 = vmatpush1.msra.mxu0 0.0
        %214 = vmatprep.subr.mxu0 0.0
        %215 = vmatpush1.msra.mxu0 0.0
        %216 = vmatprep.subr.mxu0 0.0
        %217 = vmatpush1.msra.mxu0 0.0
        %218 = vmatprep.subr.mxu0 0.0
        %219 = vmatpush1.msra.mxu0 0.0
        %220 = vmatprep.subr.mxu0 0.0
        %221 = vmatpush1.msra.mxu0 0.0
        %222 = vmatprep.subr.mxu0 0.0
        %223 = vmatpush1.msra.mxu0 0.0
        %224 = vmatprep.subr.mxu0 0.0
        %225 = vmatpush1.msra.mxu0 0.0
        %226 = vmatprep.subr.mxu0 0.0
        %227 = vmatpush1.msra.mxu0 0.0
        %228 = vmatprep.subr.mxu0 0.0
        %229 = vmatpush1.msra.mxu0 0.0
        %230 = vmatprep.subr.mxu0 0.0
        %231 = vmatpush1.msra.mxu0 0.0
        %232 = vmatprep.subr.mxu0 0.0
        %233 = vmatpush1.msra.mxu0 0.0
        %234 = vmatprep.subr.mxu0 0.0
        %235 = vmatpush1.msra.mxu0 0.0
        %236 = vmatprep.subr.mxu0 0.0
        %237 = vmatpush1.msra.mxu0 0.0
        %238 = vmatprep.subr.mxu0 0.0
        %239 = vmatpush1.msra.mxu0 0.0
        %240 = vmatprep.subr.mxu0 0.0
        %241 = vmatpush1.msra.mxu0 0.0
        %242 = vmatprep.subr.mxu0 0.0
        %243 = vmatpush1.msra.mxu0 0.0
        %244 = vmatprep.subr.mxu0 0.0
        %245 = vmatpush1.msra.mxu0 0.0
        %246 = vmatprep.subr.mxu0 0.0
        %247 = vmatpush1.msra.mxu0 0.0
        %248 = vmatprep.subr.mxu0 0.0
        %249 = vmatpush1.msra.mxu0 0.0
        %250 = vmatprep.subr.mxu0 0.0
        %251 = vmatpush1.msra.mxu0 0.0
        %252 = vmatprep.subr.mxu0 0.0
        %253 = vmatpush1.msra.mxu0 0.0
        %254 = vmatprep.subr.mxu0 0.0
        %255 = vmatpush1.msra.mxu0 0.0
        %256 = vmatprep.subr.mxu0 0.0
        %257 = vmatpush1.msra.mxu0 0.0
        %258 = vmatprep.subr.mxu0 0.0
        %259 = vmatpush1.msra.mxu0 0.0
        %260 = vmatprep.subr.mxu0 0.0
        %261 = vmatpush1.msra.mxu0 0.0
        %262 = vmatprep.subr.mxu0 0.0
        %263 = vmatpush1.msra.mxu0 0.0
        %264 = vmatprep.subr.mxu0 0.0
        %265 = vmatpush1.msra.mxu0 0.0
        %266 = vmatprep.subr.mxu0 0.0
        %267 = vmatpush1.msra.mxu0 0.0
        %268 = vmatprep.subr.mxu0 0.0
        %269 = vmatpush1.msra.mxu0 0.0
        %270 = vmatprep.mubr.f32.mxu0 0.0
        %271 = vmatmul.mubr.f32.gmra.mrb[0].mxu0 %v200
        %v272 = vpop.f32.mrb[0].mxu0
        %v273 = vadd.f32 0.0, %v272
        %v274 = vpop.f32.mrb[0].mxu0
        %275 = vdwg.mxu0
        %v277 = vrot.slane %v273, 2
        %278 = vrot.lane.b32.xlu0 %v277, 124
        %v279 = vpop.permute.xlu0 %278
        %v281 = vsub.f32 %v273, %v279
        %282 = vrot.lane.b32.xlu0 %v277, 4
        %v283 = vpop.permute.xlu0 %282
        %v285 = vadd.f32 %v273, %v283
        %v286 = vsel %vm198, %v281, %v285
        %vm287 = vcmask 58368
        %288 = vst.msk [vmem:[%s195] sm:$0x3] %vm287, %v286
        %s289 = sand.u32 %s82, 1
        %s290 = scalar_lea.sflag [#allocation4], %s289
        %s291 = sand.u32 %s82, 1
        %s292 = smul.addr %s291, 2
        %s293 = scalar_lea.vmem [#allocation7], %s292
        // Predicated region
        $region37: #{tpu_custom_call.1} parent=27 // pred_check
          %p294 = pneg %p92
        $region38: #{tpu_custom_call.1} parent=27 // pred_check_branch
          %296 = sbr.rel (%p294) target = $region40
        $region39: #{tpu_custom_call.1} parent=27 // pred_region
          %s298 = ssub.s32 32, 32
          %299 = vsyncadd %s290, %s298
          %s300 = smul.addr %s22, 32
          %s301 = scalar_lea.hbm %s2, %s300
          %s303 = sshll.u32 %s293, 4
          %s304 = int_to_ptr.vmem [resolvable:$true] %s303
          %306 = dma.vmem_to_hbm [thread:$0]  %s304, 32, %s301, %s290
        $region40: #{tpu_custom_call.1} parent=27 // pred_fallthru
          _
      $region28: #{tpu_custom_call.1} parent=5 // pred_fallthru
        _
      %p307 = scmp.le.s32.totalorder 2, %s17
      // Predicated region
      $region41: #{tpu_custom_call.1} parent=5 // pred_check
        %p308 = pneg %p307
      $region42: #{tpu_custom_call.1} parent=5 // pred_check_branch
        %310 = sbr.rel (%p308) target = $region44
      $region43: #{tpu_custom_call.1} parent=5 // pred_region
        %s311 = ssub.s32 %s17, 2
        // Predicated region
        $region45: #{tpu_custom_call.1} parent=43 // pred_check
          %p312 = pneg %p98
        $region46: #{tpu_custom_call.1} parent=43 // pred_check_branch
          %314 = sbr.rel (%p312) target = $region48
        $region47: #{tpu_custom_call.1} parent=43 // pred_region
          %s315 = sand.u32 %s83, 1
          %s316 = scalar_lea.sflag [#allocation4], %s315
          %s317 = sand.u32 %s83, 1
          %s318 = smul.addr %s317, 2
          %s319 = scalar_lea.vmem [#allocation7], %s318
          %320 = dma.done %s316, 32
        $region48: #{tpu_custom_call.1} parent=43 // pred_fallthru
          _
      $region44: #{tpu_custom_call.1} parent=5 // pred_fallthru
        _
    $region6: #{tpu_custom_call.1} parent=1 // loop_footer
      %s21 = sadd.s32 1, %s17
    $region7: #{tpu_custom_call.1} parent=1 // loop_footer_branch
      %16 = sbr.rel target = $region3
    $region8: #{tpu_custom_call.1} parent=1 // loop_exit
      _
    %321 = vsyncpa [#allocation3], 1
    %s322 = scalar_lea.sflag [#allocation3], 1
    %323 = vsyncpa %s322, 1
    %324 = vsyncpa [#allocation6], 1
    %s325 = scalar_lea.sflag [#allocation6], 1
    %326 = vsyncpa %s325, 1
    %327 = vsyncpa [#allocation4], 1
    %s328 = scalar_lea.sflag [#allocation4], 1
    %329 = vsyncpa %s328, 1

</llo_original>
